<compile_context>
chip_gen: v7x
topology: tpu7x:2x2x1
jax: 0.10.0
libtpu: 0.0.40
codegen_flags: <defaults>
</compile_context>

<pallas_src>
import functools

import jax
import jax.numpy as jnp
from jax.experimental import pallas as pl
from jax.experimental.pallas import tpu as pltpu


# Logical layer dims and 128-lane-padded dims (input dim 400 kept as-is: it is
# the full-array last dim of x, so its BlockSpec is legal without padding).
LAYER_DIMS = [(400, 300), (300, 200), (200, 100), (100, 50), (50, 1)]
PADDED_DIMS = [400, 384, 256, 128, 128, 128]


def _round_up(n, m):
    return (n + m - 1) // m * m


def mlp_kernel(x_ref,
               w1_ref, b1_ref,
               w2_ref, b2_ref,
               w3_ref, b3_ref,
               w4_ref, b4_ref,
               w5_ref, b5_ref,
               out_ref):
    # TODO(synk): Dropout (p=0.6) is implemented as identity (eval-mode
    # semantics); training-mode stochastic masking + 1/(1-p) scaling omitted.

    def dense(h, w_ref, b_ref):
        # Cast activations to the weight dtype (no-op for f32, native bf16 MXU
        # path for bf16 weights); accumulate in f32.
        z = jnp.dot(h.astype(w_ref.dtype), w_ref[...],
                    preferred_element_type=jnp.float32)
        return z + b_ref[...]

    h = x_ref[...]
    h = jnp.maximum(dense(h, w1_ref, b1_ref), 0.0)   # relu(drop1(fc1(x)))
    h = jnp.maximum(dense(h, w2_ref, b2_ref), 0.0)   # relu(drop2(fc2(h)))
    h = jnp.maximum(dense(h, w3_ref, b3_ref), 0.0)   # relu(fc3(h))
    h = jnp.maximum(dense(h, w4_ref, b4_ref), 0.0)   # relu(fc4(h))
    out_ref[...] = jax.nn.sigmoid(dense(h, w5_ref, b5_ref))  # sigmoid(fc5(h))


def pad_params(params, weight_dtype):
    """Zero-pad (in, out) weights / (1, out) biases to 128-multiple feature dims."""
    padded = []
    for i, (w, b) in enumerate(params):
        din_p, dout_p = PADDED_DIMS[i], PADDED_DIMS[i + 1]
        wp = jnp.zeros((din_p, dout_p), jnp.float32)
        wp = wp.at[: w.shape[0], : w.shape[1]].set(w)
        bp = jnp.zeros((1, dout_p), jnp.float32)
        bp = bp.at[:, : b.shape[1]].set(b)
        padded.append((wp.astype(weight_dtype), bp))  # biases stay f32
    return padded


@functools.partial(jax.jit, static_argnames=("weight_dtype", "block_batch"))
def mlp_forward(x, params, *, weight_dtype=jnp.bfloat16, block_batch=256):
    B, D = x.shape
    assert D == 400, D

    # Batch tile: large enough to feed the MXU / amortize per-step overhead,
    # small enough that double-buffered (TB, 400) f32 tiles + resident weights
    # stay well inside the scoped VMEM limit on v5e/v6e/v7x.
    TB = min(block_batch, _round_up(B, 8))
    B_pad = _round_up(B, TB)
    if B_pad != B:
        x = jnp.pad(x, ((0, B_pad - B), (0, 0)))

    padded = pad_params(params, weight_dtype)
    flat = [a for wb in padded for a in wb]

    num_tiles = pl.cdiv(B_pad, TB)

    x_spec = pl.BlockSpec((TB, 400), lambda i: (i, 0))
    # Weights/biases: full-array blocks with a constant index_map -> DMA'd once,
    # VMEM-resident for every grid step.
    param_specs = [pl.BlockSpec(a.shape, lambda i: (0, 0)) for a in flat]
    # Lane-dense (TB, 128) output tile; column 0 is the real logit.
    out_spec = pl.BlockSpec((TB, 128), lambda i: (i, 0))

    flops = 2 * B_pad * sum(PADDED_DIMS[i] * PADDED_DIMS[i + 1] for i in range(5))
    bytes_accessed = (int(x.size) * 4
                      + B_pad * 128 * 4
                      + sum(int(a.size) * a.dtype.itemsize for a in flat))
    cost = pl.CostEstimate(flops=int(flops),
                           transcendentals=int(B_pad * 128),
                           bytes_accessed=int(bytes_accessed))

    out = pl.pallas_call(
        mlp_kernel,
        out_shape=jax.ShapeDtypeStruct((B_pad, 128), jnp.float32),
        grid=(num_tiles,),
        in_specs=[x_spec] + param_specs,
        out_specs=out_spec,
        compiler_params=pltpu.CompilerParams(
            dimension_semantics=("parallel",),
        ),
        cost_estimate=cost,
    )(x, *flat)

    return out[:B, :1]


def init_params(key):
    """PyTorch-Linear-style init (U[-1/sqrt(in), 1/sqrt(in)]), f32, logical shapes.

    Weights stored as (in_features, out_features); biases as (1, out_features).
    """
    params = []
    for i, (din, dout) in enumerate(LAYER_DIMS):
        kw, kb = jax.random.split(jax.random.fold_in(key, i))
        bound = 1.0 / (din ** 0.5)
        w = jax.random.uniform(kw, (din, dout), jnp.float32, -bound, bound)
        b = jax.random.uniform(kb, (1, dout), jnp.float32, -bound, bound)
        params.append((w, b))
    return params


def mlp_reference(x, params):
    """Pure-JAX reference mirroring the kernel's dtype handling."""
    h = x.astype(jnp.float32)
    n = len(params)
    for i, (w, b) in enumerate(params):
        h = jnp.dot(h.astype(w.dtype), w,
                    preferred_element_type=jnp.float32) + b.astype(jnp.float32)
        h = jnp.maximum(h, 0.0) if i < n - 1 else jax.nn.sigmoid(h)
    return h


if __name__ == "__main__":
    key = jax.random.PRNGKey(0)
    params = init_params(key)
    x = jax.random.normal(jax.random.fold_in(key, 100), (8, 400), jnp.float32)

    # 1) Strict correctness: pure-f32 weight path vs unpadded f32 reference.
    out_f32 = jax.block_until_ready(
        mlp_forward(x, params, weight_dtype=jnp.float32))
    ref_f32 = mlp_reference(x, params)
    assert out_f32.shape == (8, 1), out_f32.shape
    assert jnp.allclose(out_f32, ref_f32, atol=1e-5, rtol=1e-5), (out_f32, ref_f32)

    # 2) Fast path: bf16 weights (f32 accumulate), looser tolerance against a
    #    reference that uses the same bf16-quantized weights.
    out_bf16 = jax.block_until_ready(
        mlp_forward(x, params, weight_dtype=jnp.bfloat16))
    params_bf16 = [(w.astype(jnp.bfloat16), b) for (w, b) in params]
    ref_bf16 = mlp_reference(x, params_bf16)
    assert out_bf16.shape == (8, 1), out_bf16.shape
    assert jnp.allclose(out_bf16, ref_bf16, atol=2e-2, rtol=2e-2), (out_bf16, ref_bf16)

    print("KERNEL_OK")
</pallas_src>

<mosaic_0001>
module attributes {stable_mosaic.version = 11 : i64} {
  func.func @mlp_kernel(%arg0: i32, %arg1: memref<8x400xf32, #tpu.memory_space<vmem>>, %arg2: memref<400x384xf32, #tpu.memory_space<vmem>>, %arg3: memref<1x384xf32, #tpu.memory_space<vmem>>, %arg4: memref<384x256xf32, #tpu.memory_space<vmem>>, %arg5: memref<1x256xf32, #tpu.memory_space<vmem>>, %arg6: memref<256x128xf32, #tpu.memory_space<vmem>>, %arg7: memref<1x128xf32, #tpu.memory_space<vmem>>, %arg8: memref<128x128xf32, #tpu.memory_space<vmem>>, %arg9: memref<1x128xf32, #tpu.memory_space<vmem>>, %arg10: memref<128x128xf32, #tpu.memory_space<vmem>>, %arg11: memref<1x128xf32, #tpu.memory_space<vmem>>, %arg12: memref<8x128xf32, #tpu.memory_space<vmem>>) attributes {dimension_semantics = [#tpu.dimension_semantics<parallel>], iteration_bounds = array<i64: 1>, scalar_prefetch = 0 : i64, scratch_operands = 0 : i64, tpu.core_type = #tpu.core_type<tc>, window_params = [{transform_indices = @transform_0, window_bounds = array<i64: 8, 400>}, {pipeline_mode = #tpu.pipeline_mode<synchronous>, transform_indices = @transform_1, window_bounds = array<i64: 400, 384>}, {pipeline_mode = #tpu.pipeline_mode<synchronous>, transform_indices = @transform_2, window_bounds = array<i64: 1, 384>}, {pipeline_mode = #tpu.pipeline_mode<synchronous>, transform_indices = @transform_3, window_bounds = array<i64: 384, 256>}, {pipeline_mode = #tpu.pipeline_mode<synchronous>, transform_indices = @transform_4, window_bounds = array<i64: 1, 256>}, {pipeline_mode = #tpu.pipeline_mode<synchronous>, transform_indices = @transform_5, window_bounds = array<i64: 256, 128>}, {pipeline_mode = #tpu.pipeline_mode<synchronous>, transform_indices = @transform_6, window_bounds = array<i64: 1, 128>}, {pipeline_mode = #tpu.pipeline_mode<synchronous>, transform_indices = @transform_7, window_bounds = array<i64: 128, 128>}, {pipeline_mode = #tpu.pipeline_mode<synchronous>, transform_indices = @transform_8, window_bounds = array<i64: 1, 128>}, {pipeline_mode = #tpu.pipeline_mode<synchronous>, transform_indices = @transform_9, window_bounds = array<i64: 128, 128>}, {pipeline_mode = #tpu.pipeline_mode<synchronous>, transform_indices = @transform_10, window_bounds = array<i64: 1, 128>}, {transform_indices = @transform_11, window_bounds = array<i64: 8, 128>}]} {
    %c0 = arith.constant 0 : index
    %c0_0 = arith.constant 0 : index
    %0 = vector.load %arg1[%c0, %c0_0] : memref<8x400xf32, #tpu.memory_space<vmem>>, vector<8x400xf32>
    %c0_1 = arith.constant 0 : index
    %c0_2 = arith.constant 0 : index
    %1 = vector.load %arg2[%c0_1, %c0_2] : memref<400x384xf32, #tpu.memory_space<vmem>>, vector<400x384xf32>
    %cst = arith.constant dense<0.000000e+00> : vector<8x384xf32>
    %2 = tpu.matmul %0, %1, %cst {dimension_numbers = #tpu.dot_dimension_numbers<[1], [0], [0], [1], [0, 0, 1, 1], [], []>} : vector<8x400xf32>, vector<400x384xf32>, vector<8x384xf32> -> vector<8x384xf32>
    %c0_3 = arith.constant 0 : index
    %c0_4 = arith.constant 0 : index
    %3 = vector.load %arg3[%c0_3, %c0_4] : memref<1x384xf32, #tpu.memory_space<vmem>>, vector<1x384xf32>
    %4 = vector.broadcast %3 : vector<1x384xf32> to vector<8x384xf32>
    %5 = arith.addf %2, %4 : vector<8x384xf32>
    %cst_5 = arith.constant 0.000000e+00 : f32
    %6 = vector.broadcast %cst_5 : f32 to vector<8x384xf32>
    %7 = arith.maximumf %5, %6 : vector<8x384xf32>
    %c0_6 = arith.constant 0 : index
    %c0_7 = arith.constant 0 : index
    %8 = vector.load %arg4[%c0_6, %c0_7] : memref<384x256xf32, #tpu.memory_space<vmem>>, vector<384x256xf32>
    %cst_8 = arith.constant dense<0.000000e+00> : vector<8x256xf32>
    %9 = tpu.matmul %7, %8, %cst_8 {dimension_numbers = #tpu.dot_dimension_numbers<[1], [0], [0], [1], [0, 0, 1, 1], [], []>} : vector<8x384xf32>, vector<384x256xf32>, vector<8x256xf32> -> vector<8x256xf32>
    %c0_9 = arith.constant 0 : index
    %c0_10 = arith.constant 0 : index
    %10 = vector.load %arg5[%c0_9, %c0_10] : memref<1x256xf32, #tpu.memory_space<vmem>>, vector<1x256xf32>
    %11 = vector.broadcast %10 : vector<1x256xf32> to vector<8x256xf32>
    %12 = arith.addf %9, %11 : vector<8x256xf32>
    %cst_11 = arith.constant 0.000000e+00 : f32
    %13 = vector.broadcast %cst_11 : f32 to vector<8x256xf32>
    %14 = arith.maximumf %12, %13 : vector<8x256xf32>
    %c0_12 = arith.constant 0 : index
    %c0_13 = arith.constant 0 : index
    %15 = vector.load %arg6[%c0_12, %c0_13] : memref<256x128xf32, #tpu.memory_space<vmem>>, vector<256x128xf32>
    %cst_14 = arith.constant dense<0.000000e+00> : vector<8x128xf32>
    %16 = tpu.matmul %14, %15, %cst_14 {dimension_numbers = #tpu.dot_dimension_numbers<[1], [0], [0], [1], [0, 0, 1, 1], [], []>} : vector<8x256xf32>, vector<256x128xf32>, vector<8x128xf32> -> vector<8x128xf32>
    %c0_15 = arith.constant 0 : index
    %c0_16 = arith.constant 0 : index
    %17 = vector.load %arg7[%c0_15, %c0_16] : memref<1x128xf32, #tpu.memory_space<vmem>>, vector<1x128xf32>
    %18 = vector.broadcast %17 : vector<1x128xf32> to vector<8x128xf32>
    %19 = arith.addf %16, %18 : vector<8x128xf32>
    %cst_17 = arith.constant 0.000000e+00 : f32
    %20 = vector.broadcast %cst_17 : f32 to vector<8x128xf32>
    %21 = arith.maximumf %19, %20 : vector<8x128xf32>
    %c0_18 = arith.constant 0 : index
    %c0_19 = arith.constant 0 : index
    %22 = vector.load %arg8[%c0_18, %c0_19] : memref<128x128xf32, #tpu.memory_space<vmem>>, vector<128x128xf32>
    %cst_20 = arith.constant dense<0.000000e+00> : vector<8x128xf32>
    %23 = tpu.matmul %21, %22, %cst_20 {dimension_numbers = #tpu.dot_dimension_numbers<[1], [0], [0], [1], [0, 0, 1, 1], [], []>} : vector<8x128xf32>, vector<128x128xf32>, vector<8x128xf32> -> vector<8x128xf32>
    %c0_21 = arith.constant 0 : index
    %c0_22 = arith.constant 0 : index
    %24 = vector.load %arg9[%c0_21, %c0_22] : memref<1x128xf32, #tpu.memory_space<vmem>>, vector<1x128xf32>
    %25 = vector.broadcast %24 : vector<1x128xf32> to vector<8x128xf32>
    %26 = arith.addf %23, %25 : vector<8x128xf32>
    %cst_23 = arith.constant 0.000000e+00 : f32
    %27 = vector.broadcast %cst_23 : f32 to vector<8x128xf32>
    %28 = arith.maximumf %26, %27 : vector<8x128xf32>
    %c0_24 = arith.constant 0 : index
    %c0_25 = arith.constant 0 : index
    %29 = vector.load %arg10[%c0_24, %c0_25] : memref<128x128xf32, #tpu.memory_space<vmem>>, vector<128x128xf32>
    %cst_26 = arith.constant dense<0.000000e+00> : vector<8x128xf32>
    %30 = tpu.matmul %28, %29, %cst_26 {dimension_numbers = #tpu.dot_dimension_numbers<[1], [0], [0], [1], [0, 0, 1, 1], [], []>} : vector<8x128xf32>, vector<128x128xf32>, vector<8x128xf32> -> vector<8x128xf32>
    %c0_27 = arith.constant 0 : index
    %c0_28 = arith.constant 0 : index
    %31 = vector.load %arg11[%c0_27, %c0_28] : memref<1x128xf32, #tpu.memory_space<vmem>>, vector<1x128xf32>
    %32 = vector.broadcast %31 : vector<1x128xf32> to vector<8x128xf32>
    %33 = arith.addf %30, %32 : vector<8x128xf32>
    %34 = arith.negf %33 : vector<8x128xf32>
    %35 = math.exp %34 : vector<8x128xf32>
    %cst_29 = arith.constant 1.000000e+00 : f32
    %36 = vector.broadcast %cst_29 : f32 to vector<8x128xf32>
    %37 = arith.addf %36, %35 : vector<8x128xf32>
    %38 = arith.divf %36, %37 : vector<8x128xf32>
    %c0_30 = arith.constant 0 : index
    %c0_31 = arith.constant 0 : index
    %39 = vector.load %arg12[%c0_30, %c0_31] : memref<8x128xf32, #tpu.memory_space<vmem>>, vector<8x128xf32>
    tpu.vector_store %arg12[%c0_30, %c0_31], %38 {strides = array<i32>} : memref<8x128xf32, #tpu.memory_space<vmem>>, vector<8x128xf32>,
    return
  }
  func.func @transform_0(%arg0: i32) -> (i32, i32) {
    %c0_i32 = arith.constant 0 : i32
    %c0_i32_0 = arith.constant 0 : i32
    return %arg0, %c0_i32 : i32, i32
  }
  func.func @transform_1(%arg0: i32) -> (i32, i32) {
    %c0_i32 = arith.constant 0 : i32
    %c0_i32_0 = arith.constant 0 : i32
    %c0_i32_1 = arith.constant 0 : i32
    return %c0_i32, %c0_i32_0 : i32, i32
  }
  func.func @transform_2(%arg0: i32) -> (i32, i32) {
    %c0_i32 = arith.constant 0 : i32
    %c0_i32_0 = arith.constant 0 : i32
    %c0_i32_1 = arith.constant 0 : i32
    return %c0_i32, %c0_i32_0 : i32, i32
  }
  func.func @transform_3(%arg0: i32) -> (i32, i32) {
    %c0_i32 = arith.constant 0 : i32
    %c0_i32_0 = arith.constant 0 : i32
    %c0_i32_1 = arith.constant 0 : i32
    return %c0_i32, %c0_i32_0 : i32, i32
  }
  func.func @transform_4(%arg0: i32) -> (i32, i32) {
    %c0_i32 = arith.constant 0 : i32
    %c0_i32_0 = arith.constant 0 : i32
    %c0_i32_1 = arith.constant 0 : i32
    return %c0_i32, %c0_i32_0 : i32, i32
  }
  func.func @transform_5(%arg0: i32) -> (i32, i32) {
    %c0_i32 = arith.constant 0 : i32
    %c0_i32_0 = arith.constant 0 : i32
    %c0_i32_1 = arith.constant 0 : i32
    return %c0_i32, %c0_i32_0 : i32, i32
  }
  func.func @transform_6(%arg0: i32) -> (i32, i32) {
    %c0_i32 = arith.constant 0 : i32
    %c0_i32_0 = arith.constant 0 : i32
    %c0_i32_1 = arith.constant 0 : i32
    return %c0_i32, %c0_i32_0 : i32, i32
  }
  func.func @transform_7(%arg0: i32) -> (i32, i32) {
    %c0_i32 = arith.constant 0 : i32
    %c0_i32_0 = arith.constant 0 : i32
    %c0_i32_1 = arith.constant 0 : i32
    return %c0_i32, %c0_i32_0 : i32, i32
  }
  func.func @transform_8(%arg0: i32) -> (i32, i32) {
    %c0_i32 = arith.constant 0 : i32
    %c0_i32_0 = arith.constant 0 : i32
    %c0_i32_1 = arith.constant 0 : i32
    return %c0_i32, %c0_i32_0 : i32, i32
  }
  func.func @transform_9(%arg0: i32) -> (i32, i32) {
    %c0_i32 = arith.constant 0 : i32
    %c0_i32_0 = arith.constant 0 : i32
    %c0_i32_1 = arith.constant 0 : i32
    return %c0_i32, %c0_i32_0 : i32, i32
  }
  func.func @transform_10(%arg0: i32) -> (i32, i32) {
    %c0_i32 = arith.constant 0 : i32
    %c0_i32_0 = arith.constant 0 : i32
    %c0_i32_1 = arith.constant 0 : i32
    return %c0_i32, %c0_i32_0 : i32, i32
  }
  func.func @transform_11(%arg0: i32) -> (i32, i32) {
    %c0_i32 = arith.constant 0 : i32
    %c0_i32_0 = arith.constant 0 : i32
    return %arg0, %c0_i32 : i32, i32
  }
}

</mosaic_0001>

<llo_original>
// kernel: mlp_forward.1
$region0: #{mlp_forward.1}
  #allocation0 [shape = 'u32[]', space=smem, size = 0x4, offset = 0x4, fixed_abs, tag = 'smem constant byte address 0x4 - core index']
  #allocation1 [shape = 'u32[144,128]{1,0:T(1,128)}', space=vmem, size = 0x12000, scoped, tag = 'internal scratch']
  %s0 = inlined_call_operand.vmem [shape: f32[8,400], index: 0, kind: input, shape index: {}]
  %s1 = inlined_call_operand.vmem [shape: f32[400,384], index: 1, kind: input, shape index: {}]
  %s2 = inlined_call_operand.vmem [shape: f32[1,384], index: 2, kind: input, shape index: {}]
  %s3 = inlined_call_operand.vmem [shape: f32[384,256], index: 3, kind: input, shape index: {}]
  %s4 = inlined_call_operand.vmem [shape: f32[1,256], index: 4, kind: input, shape index: {}]
  %s5 = inlined_call_operand.vmem [shape: f32[256,128], index: 5, kind: input, shape index: {}]
  %s6 = inlined_call_operand.vmem [shape: f32[1,128], index: 6, kind: input, shape index: {}]
  %s7 = inlined_call_operand.vmem [shape: f32[128,128], index: 7, kind: input, shape index: {}]
  %s8 = inlined_call_operand.vmem [shape: f32[1,128], index: 8, kind: input, shape index: {}]
  %s9 = inlined_call_operand.vmem [shape: f32[128,128], index: 9, kind: input, shape index: {}]
  %s10 = inlined_call_operand.vmem [shape: f32[1,128], index: 10, kind: input, shape index: {}]
  %s11 = inlined_call_operand.vmem [shape: f32[8,128], index: 11, kind: output, shape index: {}]
  %s12 = sld [smem:[#allocation0]]
  $region54: #{mlp_forward.1} parent=0
    _
  %s14 = ssub.s32 1, %s12
  %s15 = scalar_select 0, %s14, %s12
  // Predicated region
  $region2: #{mlp_forward.1} parent=0 // pred_check
    _
  $region3: #{mlp_forward.1} parent=0 // pred_check_branch
    %17 = sbr.rel (0) target = $region5
  $region4: #{mlp_forward.1} parent=0 // pred_region
    _
  $region5: #{mlp_forward.1} parent=0 // pred_fallthru
    _
  // Predicated region
  $region6: #{mlp_forward.1} parent=0 // pred_check
    _
  $region7: #{mlp_forward.1} parent=0 // pred_check_branch
    %19 = sbr.rel (0) target = $region9
  $region8: #{mlp_forward.1} parent=0 // pred_region
    _
  $region9: #{mlp_forward.1} parent=0 // pred_fallthru
    _
  // Predicated region
  $region10: #{mlp_forward.1} parent=0 // pred_check
    _
  $region11: #{mlp_forward.1} parent=0 // pred_check_branch
    %21 = sbr.rel (0) target = $region13
  $region12: #{mlp_forward.1} parent=0 // pred_region
    _
  $region13: #{mlp_forward.1} parent=0 // pred_fallthru
    _
  // Predicated region
  $region14: #{mlp_forward.1} parent=0 // pred_check
    _
  $region15: #{mlp_forward.1} parent=0 // pred_check_branch
    %23 = sbr.rel (0) target = $region17
  $region16: #{mlp_forward.1} parent=0 // pred_region
    _
  $region17: #{mlp_forward.1} parent=0 // pred_fallthru
    _
  // Predicated region
  $region18: #{mlp_forward.1} parent=0 // pred_check
    _
  $region19: #{mlp_forward.1} parent=0 // pred_check_branch
    %25 = sbr.rel (0) target = $region21
  $region20: #{mlp_forward.1} parent=0 // pred_region
    _
  $region21: #{mlp_forward.1} parent=0 // pred_fallthru
    _
  // Predicated region
  $region22: #{mlp_forward.1} parent=0 // pred_check
    _
  $region23: #{mlp_forward.1} parent=0 // pred_check_branch
    %27 = sbr.rel (0) target = $region25
  $region24: #{mlp_forward.1} parent=0 // pred_region
    _
  $region25: #{mlp_forward.1} parent=0 // pred_fallthru
    _
  // Predicated region
  $region26: #{mlp_forward.1} parent=0 // pred_check
    _
  $region27: #{mlp_forward.1} parent=0 // pred_check_branch
    %29 = sbr.rel (0) target = $region29
  $region28: #{mlp_forward.1} parent=0 // pred_region
    _
  $region29: #{mlp_forward.1} parent=0 // pred_fallthru
    _
  // Predicated region
  $region30: #{mlp_forward.1} parent=0 // pred_check
    _
  $region31: #{mlp_forward.1} parent=0 // pred_check_branch
    %31 = sbr.rel (0) target = $region33
  $region32: #{mlp_forward.1} parent=0 // pred_region
    _
  $region33: #{mlp_forward.1} parent=0 // pred_fallthru
    _
  // Predicated region
  $region34: #{mlp_forward.1} parent=0 // pred_check
    _
  $region35: #{mlp_forward.1} parent=0 // pred_check_branch
    %33 = sbr.rel (0) target = $region37
  $region36: #{mlp_forward.1} parent=0 // pred_region
    _
  $region37: #{mlp_forward.1} parent=0 // pred_fallthru
    _
  // Predicated region
  $region38: #{mlp_forward.1} parent=0 // pred_check
    _
  $region39: #{mlp_forward.1} parent=0 // pred_check_branch
    %35 = sbr.rel (0) target = $region41
  $region40: #{mlp_forward.1} parent=0 // pred_region
    _
  $region41: #{mlp_forward.1} parent=0 // pred_fallthru
    _
  // Predicated region
  $region42: #{mlp_forward.1} parent=0 // pred_check
    _
  $region43: #{mlp_forward.1} parent=0 // pred_check_branch
    %37 = sbr.rel (0) target = $region45
  $region44: #{mlp_forward.1} parent=0 // pred_region
    _
  $region45: #{mlp_forward.1} parent=0 // pred_fallthru
    _
  %v38 = vld [vmem:[%s0] sm:$0xff]
  %v39 = vld [vmem:[%s0 + $0x8] sm:$0xff]
  %v40 = vld [vmem:[%s0 + $0x10] sm:$0xff]
  %v41 = vld [vmem:[%s0 + $0x18] sm:$0xff]
  %v42 = vld [vmem:[%s1] sm:$0xff]
  %v43 = vld [vmem:[%s1 + $0x8] sm:$0xff]
  %v44 = vld [vmem:[%s1 + $0x10] sm:$0xff]
  %v45 = vld [vmem:[%s1 + $0x18] sm:$0xff]
  %v46 = vld [vmem:[%s1 + $0x20] sm:$0xff]
  %v47 = vld [vmem:[%s1 + $0x28] sm:$0xff]
  %v48 = vld [vmem:[%s1 + $0x30] sm:$0xff]
  %v49 = vld [vmem:[%s1 + $0x38] sm:$0xff]
  %v50 = vld [vmem:[%s1 + $0x40] sm:$0xff]
  %v51 = vld [vmem:[%s1 + $0x48] sm:$0xff]
  %v52 = vld [vmem:[%s1 + $0x50] sm:$0xff]
  %v53 = vld [vmem:[%s1 + $0x58] sm:$0xff]
  %v54 = vld [vmem:[%s1 + $0x60] sm:$0xff]
  %v55 = vld [vmem:[%s1 + $0x68] sm:$0xff]
  %v56 = vld [vmem:[%s1 + $0x70] sm:$0xff]
  %v57 = vld [vmem:[%s1 + $0x78] sm:$0xff]
  %v58 = vld [vmem:[%s1 + $0x80] sm:$0xff]
  %v59 = vld [vmem:[%s1 + $0x88] sm:$0xff]
  %v60 = vld [vmem:[%s1 + $0x90] sm:$0xff]
  %v61 = vld [vmem:[%s1 + $0x98] sm:$0xff]
  %v62 = vld [vmem:[%s1 + $0xa0] sm:$0xff]
  %v63 = vld [vmem:[%s1 + $0xa8] sm:$0xff]
  %v64 = vld [vmem:[%s1 + $0xb0] sm:$0xff]
  %v65 = vld [vmem:[%s1 + $0xb8] sm:$0xff]
  %v66 = vld [vmem:[%s1 + $0xc0] sm:$0xff]
  %v67 = vld [vmem:[%s1 + $0xc8] sm:$0xff]
  %v68 = vld [vmem:[%s1 + $0xd0] sm:$0xff]
  %v69 = vld [vmem:[%s1 + $0xd8] sm:$0xff]
  %v70 = vld [vmem:[%s1 + $0xe0] sm:$0xff]
  %v71 = vld [vmem:[%s1 + $0xe8] sm:$0xff]
  %v72 = vld [vmem:[%s1 + $0xf0] sm:$0xff]
  %v73 = vld [vmem:[%s1 + $0xf8] sm:$0xff]
  %v74 = vld [vmem:[%s1 + $0x100] sm:$0xff]
  %v75 = vld [vmem:[%s1 + $0x108] sm:$0xff]
  %v76 = vld [vmem:[%s1 + $0x110] sm:$0xff]
  %v77 = vld [vmem:[%s1 + $0x118] sm:$0xff]
  %v78 = vld [vmem:[%s1 + $0x120] sm:$0xff]
  %v79 = vld [vmem:[%s1 + $0x128] sm:$0xff]
  %v80 = vld [vmem:[%s1 + $0x130] sm:$0xff]
  %v81 = vld [vmem:[%s1 + $0x138] sm:$0xff]
  %v82 = vld [vmem:[%s1 + $0x140] sm:$0xff]
  %v83 = vld [vmem:[%s1 + $0x148] sm:$0xff]
  %v84 = vld [vmem:[%s1 + $0x150] sm:$0xff]
  %v85 = vld [vmem:[%s1 + $0x158] sm:$0xff]
  %v86 = vld [vmem:[%s1 + $0x160] sm:$0xff]
  %v87 = vld [vmem:[%s1 + $0x168] sm:$0xff]
  %v88 = vld [vmem:[%s1 + $0x170] sm:$0xff]
  %v89 = vld [vmem:[%s1 + $0x178] sm:$0xff]
  %v90 = vld [vmem:[%s1 + $0x180] sm:$0xff]
  %v91 = vld [vmem:[%s1 + $0x188] sm:$0xff]
  %v92 = vld [vmem:[%s1 + $0x190] sm:$0xff]
  %v93 = vld [vmem:[%s1 + $0x198] sm:$0xff]
  %v94 = vld [vmem:[%s1 + $0x1a0] sm:$0xff]
  %v95 = vld [vmem:[%s1 + $0x1a8] sm:$0xff]
  %v96 = vld [vmem:[%s1 + $0x1b0] sm:$0xff]
  %v97 = vld [vmem:[%s1 + $0x1b8] sm:$0xff]
  %v98 = vld [vmem:[%s1 + $0x1c0] sm:$0xff]
  %v99 = vld [vmem:[%s1 + $0x1c8] sm:$0xff]
  %v100 = vld [vmem:[%s1 + $0x1d0] sm:$0xff]
  %v101 = vld [vmem:[%s1 + $0x1d8] sm:$0xff]
  %v102 = vld [vmem:[%s1 + $0x1e0] sm:$0xff]
  %v103 = vld [vmem:[%s1 + $0x1e8] sm:$0xff]
  %v104 = vld [vmem:[%s1 + $0x1f0] sm:$0xff]
  %v105 = vld [vmem:[%s1 + $0x1f8] sm:$0xff]
  %v106 = vld [vmem:[%s1 + $0x200] sm:$0xff]
  %v107 = vld [vmem:[%s1 + $0x208] sm:$0xff]
  %v108 = vld [vmem:[%s1 + $0x210] sm:$0xff]
  %v109 = vld [vmem:[%s1 + $0x218] sm:$0xff]
  %v110 = vld [vmem:[%s1 + $0x220] sm:$0xff]
  %v111 = vld [vmem:[%s1 + $0x228] sm:$0xff]
  %v112 = vld [vmem:[%s1 + $0x230] sm:$0xff]
  %v113 = vld [vmem:[%s1 + $0x238] sm:$0xff]
  %v114 = vld [vmem:[%s1 + $0x240] sm:$0xff]
  %v115 = vld [vmem:[%s1 + $0x248] sm:$0xff]
  %v116 = vld [vmem:[%s1 + $0x250] sm:$0xff]
  %v117 = vld [vmem:[%s1 + $0x258] sm:$0xff]
  %v118 = vld [vmem:[%s1 + $0x260] sm:$0xff]
  %v119 = vld [vmem:[%s1 + $0x268] sm:$0xff]
  %v120 = vld [vmem:[%s1 + $0x270] sm:$0xff]
  %v121 = vld [vmem:[%s1 + $0x278] sm:$0xff]
  %v122 = vld [vmem:[%s1 + $0x280] sm:$0xff]
  %v123 = vld [vmem:[%s1 + $0x288] sm:$0xff]
  %v124 = vld [vmem:[%s1 + $0x290] sm:$0xff]
  %v125 = vld [vmem:[%s1 + $0x298] sm:$0xff]
  %v126 = vld [vmem:[%s1 + $0x2a0] sm:$0xff]
  %v127 = vld [vmem:[%s1 + $0x2a8] sm:$0xff]
  %v128 = vld [vmem:[%s1 + $0x2b0] sm:$0xff]
  %v129 = vld [vmem:[%s1 + $0x2b8] sm:$0xff]
  %v130 = vld [vmem:[%s1 + $0x2c0] sm:$0xff]
  %v131 = vld [vmem:[%s1 + $0x2c8] sm:$0xff]
  %v132 = vld [vmem:[%s1 + $0x2d0] sm:$0xff]
  %v133 = vld [vmem:[%s1 + $0x2d8] sm:$0xff]
  %v134 = vld [vmem:[%s1 + $0x2e0] sm:$0xff]
  %v135 = vld [vmem:[%s1 + $0x2e8] sm:$0xff]
  %v136 = vld [vmem:[%s1 + $0x2f0] sm:$0xff]
  %v137 = vld [vmem:[%s1 + $0x2f8] sm:$0xff]
  %v138 = vld [vmem:[%s1 + $0x300] sm:$0xff]
  %v139 = vld [vmem:[%s1 + $0x308] sm:$0xff]
  %v140 = vld [vmem:[%s1 + $0x310] sm:$0xff]
  %v141 = vld [vmem:[%s1 + $0x318] sm:$0xff]
  %v142 = vld [vmem:[%s1 + $0x320] sm:$0xff]
  %v143 = vld [vmem:[%s1 + $0x328] sm:$0xff]
  %v144 = vld [vmem:[%s1 + $0x330] sm:$0xff]
  %v145 = vld [vmem:[%s1 + $0x338] sm:$0xff]
  %v146 = vld [vmem:[%s1 + $0x340] sm:$0xff]
  %v147 = vld [vmem:[%s1 + $0x348] sm:$0xff]
  %v148 = vld [vmem:[%s1 + $0x350] sm:$0xff]
  %v149 = vld [vmem:[%s1 + $0x358] sm:$0xff]
  %v150 = vld [vmem:[%s1 + $0x360] sm:$0xff]
  %v151 = vld [vmem:[%s1 + $0x368] sm:$0xff]
  %v152 = vld [vmem:[%s1 + $0x370] sm:$0xff]
  %v153 = vld [vmem:[%s1 + $0x378] sm:$0xff]
  %v154 = vld [vmem:[%s1 + $0x380] sm:$0xff]
  %v155 = vld [vmem:[%s1 + $0x388] sm:$0xff]
  %v156 = vld [vmem:[%s1 + $0x390] sm:$0xff]
  %v157 = vld [vmem:[%s1 + $0x398] sm:$0xff]
  %v158 = vld [vmem:[%s1 + $0x3a0] sm:$0xff]
  %v159 = vld [vmem:[%s1 + $0x3a8] sm:$0xff]
  %v160 = vld [vmem:[%s1 + $0x3b0] sm:$0xff]
  %v161 = vld [vmem:[%s1 + $0x3b8] sm:$0xff]
  %v162 = vld [vmem:[%s1 + $0x3c0] sm:$0xff]
  %v163 = vld [vmem:[%s1 + $0x3c8] sm:$0xff]
  %v164 = vld [vmem:[%s1 + $0x3d0] sm:$0xff]
  %v165 = vld [vmem:[%s1 + $0x3d8] sm:$0xff]
  %v166 = vld [vmem:[%s1 + $0x3e0] sm:$0xff]
  %v167 = vld [vmem:[%s1 + $0x3e8] sm:$0xff]
  %v168 = vld [vmem:[%s1 + $0x3f0] sm:$0xff]
  %v169 = vld [vmem:[%s1 + $0x3f8] sm:$0xff]
  %v170 = vld [vmem:[%s1 + $0x400] sm:$0xff]
  %v171 = vld [vmem:[%s1 + $0x408] sm:$0xff]
  %v172 = vld [vmem:[%s1 + $0x410] sm:$0xff]
  %v173 = vld [vmem:[%s1 + $0x418] sm:$0xff]
  %v174 = vld [vmem:[%s1 + $0x420] sm:$0xff]
  %v175 = vld [vmem:[%s1 + $0x428] sm:$0xff]
  %v176 = vld [vmem:[%s1 + $0x430] sm:$0xff]
  %v177 = vld [vmem:[%s1 + $0x438] sm:$0xff]
  %v178 = vld [vmem:[%s1 + $0x440] sm:$0xff]
  %v179 = vld [vmem:[%s1 + $0x448] sm:$0xff]
  %v180 = vld [vmem:[%s1 + $0x450] sm:$0xff]
  %v181 = vld [vmem:[%s1 + $0x458] sm:$0xff]
  %v182 = vld [vmem:[%s1 + $0x460] sm:$0xff]
  %v183 = vld [vmem:[%s1 + $0x468] sm:$0xff]
  %v184 = vld [vmem:[%s1 + $0x470] sm:$0xff]
  %v185 = vld [vmem:[%s1 + $0x478] sm:$0xff]
  %v186 = vld [vmem:[%s1 + $0x480] sm:$0xff]
  %v187 = vld [vmem:[%s1 + $0x488] sm:$0xff]
  %v188 = vld [vmem:[%s1 + $0x490] sm:$0xff]
  %v189 = vld [vmem:[%s1 + $0x498] sm:$0xff]
  %v190 = vld [vmem:[%s1 + $0x4a0] sm:$0xff]
  %v191 = vld [vmem:[%s1 + $0x4a8] sm:$0xff]
  %v192 = vld [vmem:[%s2] sm:$0x7]
  %v194 = vlaneseq
  %v195 = vshrl.u32 %v194, 7
  %v196 = vsub.s32 0, %v195
  %v197 = vrot.slane %v192, %v196
  %v198 = vlaneseq
  %v199 = vshrl.u32 %v198, 7
  %v200 = vsub.s32 1, %v199
  %v201 = vrot.slane %v192, %v200
  %v202 = vlaneseq
  %v203 = vshrl.u32 %v202, 7
  %v204 = vsub.s32 2, %v203
  %v205 = vrot.slane %v192, %v204
  %vm209 = vcmask 130048
  %v211 = vsel %vm209, %v41, 0
  %213 = vmatprep.subr.mxu0 %v43
  %214 = vmatpush1.msra.mxu0 %v42
  %215 = vmatprep.subr.mxu0 %v46
  %216 = vmatpush1.msra.mxu0 %v45
  %217 = vmatprep.subr.mxu0 %v49
  %218 = vmatpush1.msra.mxu0 %v48
  %219 = vmatprep.subr.mxu0 %v52
  %220 = vmatpush1.msra.mxu0 %v51
  %221 = vmatprep.subr.mxu0 %v55
  %222 = vmatpush1.msra.mxu0 %v54
  %223 = vmatprep.subr.mxu0 %v58
  %224 = vmatpush1.msra.mxu0 %v57
  %225 = vmatprep.subr.mxu0 %v61
  %226 = vmatpush1.msra.mxu0 %v60
  %227 = vmatprep.subr.mxu0 %v64
  %228 = vmatpush1.msra.mxu0 %v63
  %229 = vmatprep.subr.mxu0 %v67
  %230 = vmatpush1.msra.mxu0 %v66
  %231 = vmatprep.subr.mxu0 %v70
  %232 = vmatpush1.msra.mxu0 %v69
  %233 = vmatprep.subr.mxu0 %v73
  %234 = vmatpush1.msra.mxu0 %v72
  %235 = vmatprep.subr.mxu0 %v76
  %236 = vmatpush1.msra.mxu0 %v75
  %237 = vmatprep.subr.mxu0 %v79
  %238 = vmatpush1.msra.mxu0 %v78
  %239 = vmatprep.subr.mxu0 %v82
  %240 = vmatpush1.msra.mxu0 %v81
  %241 = vmatprep.subr.mxu0 %v85
  %242 = vmatpush1.msra.mxu0 %v84
  %243 = vmatprep.subr.mxu0 %v88
  %244 = vmatpush1.msra.mxu0 %v87
  %245 = vmatprep.subr.mxu0 %v91
  %246 = vmatpush1.msra.mxu0 %v90
  %247 = vmatprep.subr.mxu0 %v94
  %248 = vmatpush1.msra.mxu0 %v93
  %249 = vmatprep.subr.mxu0 %v97
  %250 = vmatpush1.msra.mxu0 %v96
  %251 = vmatprep.subr.mxu0 %v100
  %252 = vmatpush1.msra.mxu0 %v99
  %253 = vmatprep.subr.mxu0 %v103
  %254 = vmatpush1.msra.mxu0 %v102
  %255 = vmatprep.subr.mxu0 %v106
  %256 = vmatpush1.msra.mxu0 %v105
  %257 = vmatprep.subr.mxu0 %v109
  %258 = vmatpush1.msra.mxu0 %v108
  %259 = vmatprep.subr.mxu0 %v112
  %260 = vmatpush1.msra.mxu0 %v111
  %261 = vmatprep.subr.mxu0 %v115
  %262 = vmatpush1.msra.mxu0 %v114
  %263 = vmatprep.subr.mxu0 %v118
  %264 = vmatpush1.msra.mxu0 %v117
  %265 = vmatprep.subr.mxu0 %v121
  %266 = vmatpush1.msra.mxu0 %v120
  %267 = vmatprep.subr.mxu0 %v124
  %268 = vmatpush1.msra.mxu0 %v123
  %269 = vmatprep.subr.mxu0 %v127
  %270 = vmatpush1.msra.mxu0 %v126
  %271 = vmatprep.subr.mxu0 %v130
  %272 = vmatpush1.msra.mxu0 %v129
  %273 = vmatprep.subr.mxu0 %v133
  %274 = vmatpush1.msra.mxu0 %v132
  %275 = vmatprep.subr.mxu0 %v136
  %276 = vmatpush1.msra.mxu0 %v135
  %277 = vmatprep.mubr.f32.mxu0 %v39
  %278 = vmatmul.mubr.f32.gmra.mrb[0].mxu0 %v38
  %v279 = vpop.f32.mrb[0].mxu0
  %v280 = vadd.f32 %v197, %v279
  %v281 = vpop.f32.mrb[0].mxu0
  %v282 = vadd.f32 %v201, %v281
  %283 = vdwg.mxu0
  %284 = vmatprep.subr.mxu0 %v139
  %285 = vmatpush1.msra.mxu0 %v138
  %286 = vmatprep.subr.mxu0 %v142
  %287 = vmatpush1.msra.mxu0 %v141
  %288 = vmatprep.subr.mxu0 %v145
  %289 = vmatpush1.msra.mxu0 %v144
  %290 = vmatprep.subr.mxu0 %v148
  %291 = vmatpush1.msra.mxu0 %v147
  %292 = vmatprep.subr.mxu0 %v151
  %293 = vmatpush1.msra.mxu0 %v150
  %294 = vmatprep.subr.mxu0 %v154
  %295 = vmatpush1.msra.mxu0 %v153
  %296 = vmatprep.subr.mxu0 %v157
  %297 = vmatpush1.msra.mxu0 %v156
  %298 = vmatprep.subr.mxu0 %v160
  %299 = vmatpush1.msra.mxu0 %v159
  %300 = vmatprep.subr.mxu0 %v163
  %301 = vmatpush1.msra.mxu0 %v162
  %302 = vmatprep.subr.mxu0 %v166
  %303 = vmatpush1.msra.mxu0 %v165
  %304 = vmatprep.subr.mxu0 %v169
  %305 = vmatpush1.msra.mxu0 %v168
  %306 = vmatprep.subr.mxu0 %v172
  %307 = vmatpush1.msra.mxu0 %v171
  %308 = vmatprep.subr.mxu0 %v175
  %309 = vmatpush1.msra.mxu0 %v174
  %310 = vmatprep.subr.mxu0 %v178
  %311 = vmatpush1.msra.mxu0 %v177
  %312 = vmatprep.subr.mxu0 %v181
  %313 = vmatpush1.msra.mxu0 %v180
  %314 = vmatprep.subr.mxu0 %v184
  %315 = vmatpush1.msra.mxu0 %v183
  %316 = vmatprep.subr.mxu0 %v187
  %317 = vmatpush1.msra.mxu0 %v186
  %318 = vmatprep.subr.mxu0 %v190
  %319 = vmatpush1.msra.mxu0 %v189
  %320 = vmatprep.subr.mxu0 0.0
  %321 = vmatpush1.msra.mxu0 0.0
  %322 = vmatprep.subr.mxu0 0.0
  %323 = vmatpush1.msra.mxu0 0.0
  %324 = vmatprep.subr.mxu0 0.0
  %325 = vmatpush1.msra.mxu0 0.0
  %326 = vmatprep.subr.mxu0 0.0
  %327 = vmatpush1.msra.mxu0 0.0
  %328 = vmatprep.subr.mxu0 0.0
  %329 = vmatpush1.msra.mxu0 0.0
  %330 = vmatprep.subr.mxu0 0.0
  %331 = vmatpush1.msra.mxu0 0.0
  %332 = vmatprep.subr.mxu0 0.0
  %333 = vmatpush1.msra.mxu0 0.0
  %334 = vmatprep.subr.mxu0 0.0
  %335 = vmatpush1.msra.mxu0 0.0
  %336 = vmatprep.subr.mxu0 0.0
  %337 = vmatpush1.msra.mxu0 0.0
  %338 = vmatprep.subr.mxu0 0.0
  %339 = vmatpush1.msra.mxu0 0.0
  %340 = vmatprep.subr.mxu0 0.0
  %341 = vmatpush1.msra.mxu0 0.0
  %342 = vmatprep.subr.mxu0 0.0
  %343 = vmatpush1.msra.mxu0 0.0
  %344 = vmatprep.subr.mxu0 0.0
  %345 = vmatpush1.msra.mxu0 0.0
  %346 = vmatprep.subr.mxu0 0.0
  %347 = vmatpush1.msra.mxu0 0.0
  %348 = vmatprep.mubr.f32.mxu0 %v211
  %349 = vmatmul.mubr.f32.gmra.mrb[0].mxu0 %v40
  %v350 = vpop.f32.mrb[0].mxu0
  %v351 = vadd.f32 %v280, %v350
  %v352 = vpop.f32.mrb[0].mxu0
  %v353 = vadd.f32 %v282, %v352
  %354 = vdwg.mxu0
  %355 = vmatprep.subr.mxu0 0.0
  %356 = vmatpush1.msra.mxu0 %v44
  %357 = vmatprep.subr.mxu0 0.0
  %358 = vmatpush1.msra.mxu0 %v47
  %359 = vmatprep.subr.mxu0 0.0
  %360 = vmatpush1.msra.mxu0 %v50
  %361 = vmatprep.subr.mxu0 0.0
  %362 = vmatpush1.msra.mxu0 %v53
  %363 = vmatprep.subr.mxu0 0.0
  %364 = vmatpush1.msra.mxu0 %v56
  %365 = vmatprep.subr.mxu0 0.0
  %366 = vmatpush1.msra.mxu0 %v59
  %367 = vmatprep.subr.mxu0 0.0
  %368 = vmatpush1.msra.mxu0 %v62
  %369 = vmatprep.subr.mxu0 0.0
  %370 = vmatpush1.msra.mxu0 %v65
  %371 = vmatprep.subr.mxu0 0.0
  %372 = vmatpush1.msra.mxu0 %v68
  %373 = vmatprep.subr.mxu0 0.0
  %374 = vmatpush1.msra.mxu0 %v71
  %375 = vmatprep.subr.mxu0 0.0
  %376 = vmatpush1.msra.mxu0 %v74
  %377 = vmatprep.subr.mxu0 0.0
  %378 = vmatpush1.msra.mxu0 %v77
  %379 = vmatprep.subr.mxu0 0.0
  %380 = vmatpush1.msra.mxu0 %v80
  %381 = vmatprep.subr.mxu0 0.0
  %382 = vmatpush1.msra.mxu0 %v83
  %383 = vmatprep.subr.mxu0 0.0
  %384 = vmatpush1.msra.mxu0 %v86
  %385 = vmatprep.subr.mxu0 0.0
  %386 = vmatpush1.msra.mxu0 %v89
  %387 = vmatprep.subr.mxu0 0.0
  %388 = vmatpush1.msra.mxu0 %v92
  %389 = vmatprep.subr.mxu0 0.0
  %390 = vmatpush1.msra.mxu0 %v95
  %391 = vmatprep.subr.mxu0 0.0
  %392 = vmatpush1.msra.mxu0 %v98
  %393 = vmatprep.subr.mxu0 0.0
  %394 = vmatpush1.msra.mxu0 %v101
  %395 = vmatprep.subr.mxu0 0.0
  %396 = vmatpush1.msra.mxu0 %v104
  %397 = vmatprep.subr.mxu0 0.0
  %398 = vmatpush1.msra.mxu0 %v107
  %399 = vmatprep.subr.mxu0 0.0
  %400 = vmatpush1.msra.mxu0 %v110
  %401 = vmatprep.subr.mxu0 0.0
  %402 = vmatpush1.msra.mxu0 %v113
  %403 = vmatprep.subr.mxu0 0.0
  %404 = vmatpush1.msra.mxu0 %v116
  %405 = vmatprep.subr.mxu0 0.0
  %406 = vmatpush1.msra.mxu0 %v119
  %407 = vmatprep.subr.mxu0 0.0
  %408 = vmatpush1.msra.mxu0 %v122
  %409 = vmatprep.subr.mxu0 0.0
  %410 = vmatpush1.msra.mxu0 %v125
  %411 = vmatprep.subr.mxu0 0.0
  %412 = vmatpush1.msra.mxu0 %v128
  %413 = vmatprep.subr.mxu0 0.0
  %414 = vmatpush1.msra.mxu0 %v131
  %415 = vmatprep.subr.mxu0 0.0
  %416 = vmatpush1.msra.mxu0 %v134
  %417 = vmatprep.subr.mxu0 0.0
  %418 = vmatpush1.msra.mxu0 %v137
  %419 = vmatprep.mubr.f32.mxu0 %v39
  %420 = vmatmul.mubr.f32.gmra.mrb[0].mxu0 %v38
  %v421 = vpop.f32.mrb[0].mxu0
  %v422 = vadd.f32 %v205, %v421
  %v423 = vpop.f32.mrb[0].mxu0
  %424 = vdwg.mxu0
  %425 = vmatprep.subr.mxu0 0.0
  %426 = vmatpush1.msra.mxu0 %v140
  %427 = vmatprep.subr.mxu0 0.0
  %428 = vmatpush1.msra.mxu0 %v143
  %429 = vmatprep.subr.mxu0 0.0
  %430 = vmatpush1.msra.mxu0 %v146
  %431 = vmatprep.subr.mxu0 0.0
  %432 = vmatpush1.msra.mxu0 %v149
  %433 = vmatprep.subr.mxu0 0.0
  %434 = vmatpush1.msra.mxu0 %v152
  %435 = vmatprep.subr.mxu0 0.0
  %436 = vmatpush1.msra.mxu0 %v155
  %437 = vmatprep.subr.mxu0 0.0
  %438 = vmatpush1.msra.mxu0 %v158
  %439 = vmatprep.subr.mxu0 0.0
  %440 = vmatpush1.msra.mxu0 %v161
  %441 = vmatprep.subr.mxu0 0.0
  %442 = vmatpush1.msra.mxu0 %v164
  %443 = vmatprep.subr.mxu0 0.0
  %444 = vmatpush1.msra.mxu0 %v167
  %445 = vmatprep.subr.mxu0 0.0
  %446 = vmatpush1.msra.mxu0 %v170
  %447 = vmatprep.subr.mxu0 0.0
  %448 = vmatpush1.msra.mxu0 %v173
  %449 = vmatprep.subr.mxu0 0.0
  %450 = vmatpush1.msra.mxu0 %v176
  %451 = vmatprep.subr.mxu0 0.0
  %452 = vmatpush1.msra.mxu0 %v179
  %453 = vmatprep.subr.mxu0 0.0
  %454 = vmatpush1.msra.mxu0 %v182
  %455 = vmatprep.subr.mxu0 0.0
  %456 = vmatpush1.msra.mxu0 %v185
  %457 = vmatprep.subr.mxu0 0.0
  %458 = vmatpush1.msra.mxu0 %v188
  %459 = vmatprep.subr.mxu0 0.0
  %460 = vmatpush1.msra.mxu0 %v191
  %461 = vmatprep.subr.mxu0 0.0
  %462 = vmatpush1.msra.mxu0 0.0
  %463 = vmatprep.subr.mxu0 0.0
  %464 = vmatpush1.msra.mxu0 0.0
  %465 = vmatprep.subr.mxu0 0.0
  %466 = vmatpush1.msra.mxu0 0.0
  %467 = vmatprep.subr.mxu0 0.0
  %468 = vmatpush1.msra.mxu0 0.0
  %469 = vmatprep.subr.mxu0 0.0
  %470 = vmatpush1.msra.mxu0 0.0
  %471 = vmatprep.subr.mxu0 0.0
  %472 = vmatpush1.msra.mxu0 0.0
  %473 = vmatprep.subr.mxu0 0.0
  %474 = vmatpush1.msra.mxu0 0.0
  %475 = vmatprep.subr.mxu0 0.0
  %476 = vmatpush1.msra.mxu0 0.0
  %477 = vmatprep.subr.mxu0 0.0
  %478 = vmatpush1.msra.mxu0 0.0
  %479 = vmatprep.subr.mxu0 0.0
  %480 = vmatpush1.msra.mxu0 0.0
  %481 = vmatprep.subr.mxu0 0.0
  %482 = vmatpush1.msra.mxu0 0.0
  %483 = vmatprep.subr.mxu0 0.0
  %484 = vmatpush1.msra.mxu0 0.0
  %485 = vmatprep.subr.mxu0 0.0
  %486 = vmatpush1.msra.mxu0 0.0
  %487 = vmatprep.subr.mxu0 0.0
  %488 = vmatpush1.msra.mxu0 0.0
  %489 = vmatprep.mubr.f32.mxu0 %v211
  %490 = vmatmul.mubr.f32.gmra.mrb[0].mxu0 %v40
  %v491 = vpop.f32.mrb[0].mxu0
  %v492 = vadd.f32 %v422, %v491
  %v493 = vpop.f32.mrb[0].mxu0
  %494 = vdwg.mxu0
  %v495 = vmax.f32 %v351, 0.0
  %v496 = vmax.f32 %v353, 0.0
  %v497 = vmax.f32 %v492, 0.0
  %v498 = vld [vmem:[%s3] sm:$0xff]
  %v499 = vld [vmem:[%s3 + $0x8] sm:$0xff]
  %v500 = vld [vmem:[%s3 + $0x10] sm:$0xff]
  %v501 = vld [vmem:[%s3 + $0x18] sm:$0xff]
  %v502 = vld [vmem:[%s3 + $0x20] sm:$0xff]
  %v503 = vld [vmem:[%s3 + $0x28] sm:$0xff]
  %v504 = vld [vmem:[%s3 + $0x30] sm:$0xff]
  %v505 = vld [vmem:[%s3 + $0x38] sm:$0xff]
  %v506 = vld [vmem:[%s3 + $0x40] sm:$0xff]
  %v507 = vld [vmem:[%s3 + $0x48] sm:$0xff]
  %v508 = vld [vmem:[%s3 + $0x50] sm:$0xff]
  %v509 = vld [vmem:[%s3 + $0x58] sm:$0xff]
  %v510 = vld [vmem:[%s3 + $0x60] sm:$0xff]
  %v511 = vld [vmem:[%s3 + $0x68] sm:$0xff]
  %v512 = vld [vmem:[%s3 + $0x70] sm:$0xff]
  %v513 = vld [vmem:[%s3 + $0x78] sm:$0xff]
  %v514 = vld [vmem:[%s3 + $0x80] sm:$0xff]
  %v515 = vld [vmem:[%s3 + $0x88] sm:$0xff]
  %v516 = vld [vmem:[%s3 + $0x90] sm:$0xff]
  %v517 = vld [vmem:[%s3 + $0x98] sm:$0xff]
  %v518 = vld [vmem:[%s3 + $0xa0] sm:$0xff]
  %v519 = vld [vmem:[%s3 + $0xa8] sm:$0xff]
  %v520 = vld [vmem:[%s3 + $0xb0] sm:$0xff]
  %v521 = vld [vmem:[%s3 + $0xb8] sm:$0xff]
  %v522 = vld [vmem:[%s3 + $0xc0] sm:$0xff]
  %v523 = vld [vmem:[%s3 + $0xc8] sm:$0xff]
  %v524 = vld [vmem:[%s3 + $0xd0] sm:$0xff]
  %v525 = vld [vmem:[%s3 + $0xd8] sm:$0xff]
  %v526 = vld [vmem:[%s3 + $0xe0] sm:$0xff]
  %v527 = vld [vmem:[%s3 + $0xe8] sm:$0xff]
  %v528 = vld [vmem:[%s3 + $0xf0] sm:$0xff]
  %v529 = vld [vmem:[%s3 + $0xf8] sm:$0xff]
  %v530 = vld [vmem:[%s3 + $0x100] sm:$0xff]
  %v531 = vld [vmem:[%s3 + $0x108] sm:$0xff]
  %v532 = vld [vmem:[%s3 + $0x110] sm:$0xff]
  %v533 = vld [vmem:[%s3 + $0x118] sm:$0xff]
  %v534 = vld [vmem:[%s3 + $0x120] sm:$0xff]
  %v535 = vld [vmem:[%s3 + $0x128] sm:$0xff]
  %v536 = vld [vmem:[%s3 + $0x130] sm:$0xff]
  %v537 = vld [vmem:[%s3 + $0x138] sm:$0xff]
  %v538 = vld [vmem:[%s3 + $0x140] sm:$0xff]
  %v539 = vld [vmem:[%s3 + $0x148] sm:$0xff]
  %v540 = vld [vmem:[%s3 + $0x150] sm:$0xff]
  %v541 = vld [vmem:[%s3 + $0x158] sm:$0xff]
  %v542 = vld [vmem:[%s3 + $0x160] sm:$0xff]
  %v543 = vld [vmem:[%s3 + $0x168] sm:$0xff]
  %v544 = vld [vmem:[%s3 + $0x170] sm:$0xff]
  %v545 = vld [vmem:[%s3 + $0x178] sm:$0xff]
  %v546 = vld [vmem:[%s3 + $0x180] sm:$0xff]
  %v547 = vld [vmem:[%s3 + $0x188] sm:$0xff]
  %v548 = vld [vmem:[%s3 + $0x190] sm:$0xff]
  %v549 = vld [vmem:[%s3 + $0x198] sm:$0xff]
  %v550 = vld [vmem:[%s3 + $0x1a0] sm:$0xff]
  %v551 = vld [vmem:[%s3 + $0x1a8] sm:$0xff]
  %v552 = vld [vmem:[%s3 + $0x1b0] sm:$0xff]
  %v553 = vld [vmem:[%s3 + $0x1b8] sm:$0xff]
  %v554 = vld [vmem:[%s3 + $0x1c0] sm:$0xff]
  %v555 = vld [vmem:[%s3 + $0x1c8] sm:$0xff]
  %v556 = vld [vmem:[%s3 + $0x1d0] sm:$0xff]
  %v557 = vld [vmem:[%s3 + $0x1d8] sm:$0xff]
  %v558 = vld [vmem:[%s3 + $0x1e0] sm:$0xff]
  %v559 = vld [vmem:[%s3 + $0x1e8] sm:$0xff]
  %v560 = vld [vmem:[%s3 + $0x1f0] sm:$0xff]
  %v561 = vld [vmem:[%s3 + $0x1f8] sm:$0xff]
  %v562 = vld [vmem:[%s3 + $0x200] sm:$0xff]
  %v563 = vld [vmem:[%s3 + $0x208] sm:$0xff]
  %v564 = vld [vmem:[%s3 + $0x210] sm:$0xff]
  %v565 = vld [vmem:[%s3 + $0x218] sm:$0xff]
  %v566 = vld [vmem:[%s3 + $0x220] sm:$0xff]
  %v567 = vld [vmem:[%s3 + $0x228] sm:$0xff]
  %v568 = vld [vmem:[%s3 + $0x230] sm:$0xff]
  %v569 = vld [vmem:[%s3 + $0x238] sm:$0xff]
  %v570 = vld [vmem:[%s3 + $0x240] sm:$0xff]
  %v571 = vld [vmem:[%s3 + $0x248] sm:$0xff]
  %v572 = vld [vmem:[%s3 + $0x250] sm:$0xff]
  %v573 = vld [vmem:[%s3 + $0x258] sm:$0xff]
  %v574 = vld [vmem:[%s3 + $0x260] sm:$0xff]
  %v575 = vld [vmem:[%s3 + $0x268] sm:$0xff]
  %v576 = vld [vmem:[%s3 + $0x270] sm:$0xff]
  %v577 = vld [vmem:[%s3 + $0x278] sm:$0xff]
  %v578 = vld [vmem:[%s3 + $0x280] sm:$0xff]
  %v579 = vld [vmem:[%s3 + $0x288] sm:$0xff]
  %v580 = vld [vmem:[%s3 + $0x290] sm:$0xff]
  %v581 = vld [vmem:[%s3 + $0x298] sm:$0xff]
  %v582 = vld [vmem:[%s3 + $0x2a0] sm:$0xff]
  %v583 = vld [vmem:[%s3 + $0x2a8] sm:$0xff]
  %v584 = vld [vmem:[%s3 + $0x2b0] sm:$0xff]
  %v585 = vld [vmem:[%s3 + $0x2b8] sm:$0xff]
  %v586 = vld [vmem:[%s3 + $0x2c0] sm:$0xff]
  %v587 = vld [vmem:[%s3 + $0x2c8] sm:$0xff]
  %v588 = vld [vmem:[%s3 + $0x2d0] sm:$0xff]
  %v589 = vld [vmem:[%s3 + $0x2d8] sm:$0xff]
  %v590 = vld [vmem:[%s3 + $0x2e0] sm:$0xff]
  %v591 = vld [vmem:[%s3 + $0x2e8] sm:$0xff]
  %v592 = vld [vmem:[%s3 + $0x2f0] sm:$0xff]
  %v593 = vld [vmem:[%s3 + $0x2f8] sm:$0xff]
  %v594 = vld [vmem:[%s4] sm:$0x3]
  %v596 = vlaneseq
  %v597 = vshrl.u32 %v596, 7
  %v598 = vsub.s32 0, %v597
  %v599 = vrot.slane %v594, %v598
  %v600 = vlaneseq
  %v601 = vshrl.u32 %v600, 7
  %v602 = vsub.s32 1, %v601
  %v603 = vrot.slane %v594, %v602
  %606 = vmatprep.subr.mxu0 %v499
  %607 = vmatpush1.msra.mxu0 %v498
  %608 = vmatprep.subr.mxu0 %v501
  %609 = vmatpush1.msra.mxu0 %v500
  %610 = vmatprep.subr.mxu0 %v503
  %611 = vmatpush1.msra.mxu0 %v502
  %612 = vmatprep.subr.mxu0 %v505
  %613 = vmatpush1.msra.mxu0 %v504
  %614 = vmatprep.subr.mxu0 %v507
  %615 = vmatpush1.msra.mxu0 %v506
  %616 = vmatprep.subr.mxu0 %v509
  %617 = vmatpush1.msra.mxu0 %v508
  %618 = vmatprep.subr.mxu0 %v511
  %619 = vmatpush1.msra.mxu0 %v510
  %620 = vmatprep.subr.mxu0 %v513
  %621 = vmatpush1.msra.mxu0 %v512
  %622 = vmatprep.subr.mxu0 %v515
  %623 = vmatpush1.msra.mxu0 %v514
  %624 = vmatprep.subr.mxu0 %v517
  %625 = vmatpush1.msra.mxu0 %v516
  %626 = vmatprep.subr.mxu0 %v519
  %627 = vmatpush1.msra.mxu0 %v518
  %628 = vmatprep.subr.mxu0 %v521
  %629 = vmatpush1.msra.mxu0 %v520
  %630 = vmatprep.subr.mxu0 %v523
  %631 = vmatpush1.msra.mxu0 %v522
  %632 = vmatprep.subr.mxu0 %v525
  %633 = vmatpush1.msra.mxu0 %v524
  %634 = vmatprep.subr.mxu0 %v527
  %635 = vmatpush1.msra.mxu0 %v526
  %636 = vmatprep.subr.mxu0 %v529
  %637 = vmatpush1.msra.mxu0 %v528
  %638 = vmatprep.subr.mxu0 %v531
  %639 = vmatpush1.msra.mxu0 %v530
  %640 = vmatprep.subr.mxu0 %v533
  %641 = vmatpush1.msra.mxu0 %v532
  %642 = vmatprep.subr.mxu0 %v535
  %643 = vmatpush1.msra.mxu0 %v534
  %644 = vmatprep.subr.mxu0 %v537
  %645 = vmatpush1.msra.mxu0 %v536
  %646 = vmatprep.subr.mxu0 %v539
  %647 = vmatpush1.msra.mxu0 %v538
  %648 = vmatprep.subr.mxu0 %v541
  %649 = vmatpush1.msra.mxu0 %v540
  %650 = vmatprep.subr.mxu0 %v543
  %651 = vmatpush1.msra.mxu0 %v542
  %652 = vmatprep.subr.mxu0 %v545
  %653 = vmatpush1.msra.mxu0 %v544
  %654 = vmatprep.subr.mxu0 %v547
  %655 = vmatpush1.msra.mxu0 %v546
  %656 = vmatprep.subr.mxu0 %v549
  %657 = vmatpush1.msra.mxu0 %v548
  %658 = vmatprep.subr.mxu0 %v551
  %659 = vmatpush1.msra.mxu0 %v550
  %660 = vmatprep.subr.mxu0 %v553
  %661 = vmatpush1.msra.mxu0 %v552
  %662 = vmatprep.subr.mxu0 %v555
  %663 = vmatpush1.msra.mxu0 %v554
  %664 = vmatprep.subr.mxu0 %v557
  %665 = vmatpush1.msra.mxu0 %v556
  %666 = vmatprep.subr.mxu0 %v559
  %667 = vmatpush1.msra.mxu0 %v558
  %668 = vmatprep.subr.mxu0 %v561
  %669 = vmatpush1.msra.mxu0 %v560
  %670 = vmatprep.mubr.f32.mxu0 %v496
  %671 = vmatmul.mubr.f32.gmra.mrb[0].mxu0 %v495
  %v672 = vpop.f32.mrb[0].mxu0
  %v673 = vadd.f32 %v599, %v672
  %v674 = vpop.f32.mrb[0].mxu0
  %v675 = vadd.f32 %v603, %v674
  %676 = vdwg.mxu0
  %677 = vmatprep.subr.mxu0 %v563
  %678 = vmatpush1.msra.mxu0 %v562
  %679 = vmatprep.subr.mxu0 %v565
  %680 = vmatpush1.msra.mxu0 %v564
  %681 = vmatprep.subr.mxu0 %v567
  %682 = vmatpush1.msra.mxu0 %v566
  %683 = vmatprep.subr.mxu0 %v569
  %684 = vmatpush1.msra.mxu0 %v568
  %685 = vmatprep.subr.mxu0 %v571
  %686 = vmatpush1.msra.mxu0 %v570
  %687 = vmatprep.subr.mxu0 %v573
  %688 = vmatpush1.msra.mxu0 %v572
  %689 = vmatprep.subr.mxu0 %v575
  %690 = vmatpush1.msra.mxu0 %v574
  %691 = vmatprep.subr.mxu0 %v577
  %692 = vmatpush1.msra.mxu0 %v576
  %693 = vmatprep.subr.mxu0 %v579
  %694 = vmatpush1.msra.mxu0 %v578
  %695 = vmatprep.subr.mxu0 %v581
  %696 = vmatpush1.msra.mxu0 %v580
  %697 = vmatprep.subr.mxu0 %v583
  %698 = vmatpush1.msra.mxu0 %v582
  %699 = vmatprep.subr.mxu0 %v585
  %700 = vmatpush1.msra.mxu0 %v584
  %701 = vmatprep.subr.mxu0 %v587
  %702 = vmatpush1.msra.mxu0 %v586
  %703 = vmatprep.subr.mxu0 %v589
  %704 = vmatpush1.msra.mxu0 %v588
  %705 = vmatprep.subr.mxu0 %v591
  %706 = vmatpush1.msra.mxu0 %v590
  %707 = vmatprep.subr.mxu0 %v593
  %708 = vmatpush1.msra.mxu0 %v592
  %709 = vmatprep.subr.mxu0 0.0
  %710 = vmatpush1.msra.mxu0 0.0
  %711 = vmatprep.subr.mxu0 0.0
  %712 = vmatpush1.msra.mxu0 0.0
  %713 = vmatprep.subr.mxu0 0.0
  %714 = vmatpush1.msra.mxu0 0.0
  %715 = vmatprep.subr.mxu0 0.0
  %716 = vmatpush1.msra.mxu0 0.0
  %717 = vmatprep.subr.mxu0 0.0
  %718 = vmatpush1.msra.mxu0 0.0
  %719 = vmatprep.subr.mxu0 0.0
  %720 = vmatpush1.msra.mxu0 0.0
  %721 = vmatprep.subr.mxu0 0.0
  %722 = vmatpush1.msra.mxu0 0.0
  %723 = vmatprep.subr.mxu0 0.0
  %724 = vmatpush1.msra.mxu0 0.0
  %725 = vmatprep.subr.mxu0 0.0
  %726 = vmatpush1.msra.mxu0 0.0
  %727 = vmatprep.subr.mxu0 0.0
  %728 = vmatpush1.msra.mxu0 0.0
  %729 = vmatprep.subr.mxu0 0.0
  %730 = vmatpush1.msra.mxu0 0.0
  %731 = vmatprep.subr.mxu0 0.0
  %732 = vmatpush1.msra.mxu0 0.0
  %733 = vmatprep.subr.mxu0 0.0
  %734 = vmatpush1.msra.mxu0 0.0
  %735 = vmatprep.subr.mxu0 0.0
  %736 = vmatpush1.msra.mxu0 0.0
  %737 = vmatprep.subr.mxu0 0.0
  %738 = vmatpush1.msra.mxu0 0.0
  %739 = vmatprep.subr.mxu0 0.0
  %740 = vmatpush1.msra.mxu0 0.0
  %741 = vmatprep.mubr.f32.mxu0 0.0
  %742 = vmatmul.mubr.f32.gmra.mrb[0].mxu0 %v497
  %v743 = vpop.f32.mrb[0].mxu0
  %v744 = vadd.f32 %v673, %v743
  %v745 = vpop.f32.mrb[0].mxu0
  %v746 = vadd.f32 %v675, %v745
  %747 = vdwg.mxu0
  %v748 = vmax.f32 %v744, 0.0
  %v749 = vmax.f32 %v746, 0.0
  %v750 = vld [vmem:[%s5] sm:$0xff]
  %v751 = vld [vmem:[%s5 + $0x8] sm:$0xff]
  %v752 = vld [vmem:[%s5 + $0x10] sm:$0xff]
  %v753 = vld [vmem:[%s5 + $0x18] sm:$0xff]
  %v754 = vld [vmem:[%s5 + $0x20] sm:$0xff]
  %v755 = vld [vmem:[%s5 + $0x28] sm:$0xff]
  %v756 = vld [vmem:[%s5 + $0x30] sm:$0xff]
  %v757 = vld [vmem:[%s5 + $0x38] sm:$0xff]
  %v758 = vld [vmem:[%s5 + $0x40] sm:$0xff]
  %v759 = vld [vmem:[%s5 + $0x48] sm:$0xff]
  %v760 = vld [vmem:[%s5 + $0x50] sm:$0xff]
  %v761 = vld [vmem:[%s5 + $0x58] sm:$0xff]
  %v762 = vld [vmem:[%s5 + $0x60] sm:$0xff]
  %v763 = vld [vmem:[%s5 + $0x68] sm:$0xff]
  %v764 = vld [vmem:[%s5 + $0x70] sm:$0xff]
  %v765 = vld [vmem:[%s5 + $0x78] sm:$0xff]
  %v766 = vld [vmem:[%s5 + $0x80] sm:$0xff]
  %v767 = vld [vmem:[%s5 + $0x88] sm:$0xff]
  %v768 = vld [vmem:[%s5 + $0x90] sm:$0xff]
  %v769 = vld [vmem:[%s5 + $0x98] sm:$0xff]
  %v770 = vld [vmem:[%s5 + $0xa0] sm:$0xff]
  %v771 = vld [vmem:[%s5 + $0xa8] sm:$0xff]
  %v772 = vld [vmem:[%s5 + $0xb0] sm:$0xff]
  %v773 = vld [vmem:[%s5 + $0xb8] sm:$0xff]
  %v774 = vld [vmem:[%s5 + $0xc0] sm:$0xff]
  %v775 = vld [vmem:[%s5 + $0xc8] sm:$0xff]
  %v776 = vld [vmem:[%s5 + $0xd0] sm:$0xff]
  %v777 = vld [vmem:[%s5 + $0xd8] sm:$0xff]
  %v778 = vld [vmem:[%s5 + $0xe0] sm:$0xff]
  %v779 = vld [vmem:[%s5 + $0xe8] sm:$0xff]
  %v780 = vld [vmem:[%s5 + $0xf0] sm:$0xff]
  %v781 = vld [vmem:[%s5 + $0xf8] sm:$0xff]
  %v782 = vld [vmem:[%s6] sm:$0x1]
  %v784 = vlaneseq
  %v785 = vshrl.u32 %v784, 7
  %v786 = vsub.s32 0, %v785
  %v787 = vrot.slane %v782, %v786
  %789 = vmatprep.subr.mxu0 0.0
  %790 = vmatpush1.msra.mxu0 %v750
  %791 = vmatprep.subr.mxu0 0.0
  %792 = vmatpush1.msra.mxu0 %v751
  %793 = vmatprep.subr.mxu0 0.0
  %794 = vmatpush1.msra.mxu0 %v752
  %795 = vmatprep.subr.mxu0 0.0
  %796 = vmatpush1.msra.mxu0 %v753
  %797 = vmatprep.subr.mxu0 0.0
  %798 = vmatpush1.msra.mxu0 %v754
  %799 = vmatprep.subr.mxu0 0.0
  %800 = vmatpush1.msra.mxu0 %v755
  %801 = vmatprep.subr.mxu0 0.0
  %802 = vmatpush1.msra.mxu0 %v756
  %803 = vmatprep.subr.mxu0 0.0
  %804 = vmatpush1.msra.mxu0 %v757
  %805 = vmatprep.subr.mxu0 0.0
  %806 = vmatpush1.msra.mxu0 %v758
  %807 = vmatprep.subr.mxu0 0.0
  %808 = vmatpush1.msra.mxu0 %v759
  %809 = vmatprep.subr.mxu0 0.0
  %810 = vmatpush1.msra.mxu0 %v760
  %811 = vmatprep.subr.mxu0 0.0
  %812 = vmatpush1.msra.mxu0 %v761
  %813 = vmatprep.subr.mxu0 0.0
  %814 = vmatpush1.msra.mxu0 %v762
  %815 = vmatprep.subr.mxu0 0.0
  %816 = vmatpush1.msra.mxu0 %v763
  %817 = vmatprep.subr.mxu0 0.0
  %818 = vmatpush1.msra.mxu0 %v764
  %819 = vmatprep.subr.mxu0 0.0
  %820 = vmatpush1.msra.mxu0 %v765
  %821 = vmatprep.subr.mxu0 0.0
  %822 = vmatpush1.msra.mxu0 %v766
  %823 = vmatprep.subr.mxu0 0.0
  %824 = vmatpush1.msra.mxu0 %v767
  %825 = vmatprep.subr.mxu0 0.0
  %826 = vmatpush1.msra.mxu0 %v768
  %827 = vmatprep.subr.mxu0 0.0
  %828 = vmatpush1.msra.mxu0 %v769
  %829 = vmatprep.subr.mxu0 0.0
  %830 = vmatpush1.msra.mxu0 %v770
  %831 = vmatprep.subr.mxu0 0.0
  %832 = vmatpush1.msra.mxu0 %v771
  %833 = vmatprep.subr.mxu0 0.0
  %834 = vmatpush1.msra.mxu0 %v772
  %835 = vmatprep.subr.mxu0 0.0
  %836 = vmatpush1.msra.mxu0 %v773
  %837 = vmatprep.subr.mxu0 0.0
  %838 = vmatpush1.msra.mxu0 %v774
  %839 = vmatprep.subr.mxu0 0.0
  %840 = vmatpush1.msra.mxu0 %v775
  %841 = vmatprep.subr.mxu0 0.0
  %842 = vmatpush1.msra.mxu0 %v776
  %843 = vmatprep.subr.mxu0 0.0
  %844 = vmatpush1.msra.mxu0 %v777
  %845 = vmatprep.subr.mxu0 0.0
  %846 = vmatpush1.msra.mxu0 %v778
  %847 = vmatprep.subr.mxu0 0.0
  %848 = vmatpush1.msra.mxu0 %v779
  %849 = vmatprep.subr.mxu0 0.0
  %850 = vmatpush1.msra.mxu0 %v780
  %851 = vmatprep.subr.mxu0 0.0
  %852 = vmatpush1.msra.mxu0 %v781
  %853 = vmatprep.mubr.f32.mxu0 %v749
  %854 = vmatmul.mubr.f32.gmra.mrb[0].mxu0 %v748
  %v855 = vpop.f32.mrb[0].mxu0
  %v856 = vadd.f32 %v787, %v855
  %v857 = vpop.f32.mrb[0].mxu0
  %858 = vdwg.mxu0
  %v859 = vmax.f32 %v856, 0.0
  %v860 = vld [vmem:[%s7] sm:$0xff]
  %v861 = vld [vmem:[%s7 + $0x8] sm:$0xff]
  %v862 = vld [vmem:[%s7 + $0x10] sm:$0xff]
  %v863 = vld [vmem:[%s7 + $0x18] sm:$0xff]
  %v864 = vld [vmem:[%s7 + $0x20] sm:$0xff]
  %v865 = vld [vmem:[%s7 + $0x28] sm:$0xff]
  %v866 = vld [vmem:[%s7 + $0x30] sm:$0xff]
  %v867 = vld [vmem:[%s7 + $0x38] sm:$0xff]
  %v868 = vld [vmem:[%s7 + $0x40] sm:$0xff]
  %v869 = vld [vmem:[%s7 + $0x48] sm:$0xff]
  %v870 = vld [vmem:[%s7 + $0x50] sm:$0xff]
  %v871 = vld [vmem:[%s7 + $0x58] sm:$0xff]
  %v872 = vld [vmem:[%s7 + $0x60] sm:$0xff]
  %v873 = vld [vmem:[%s7 + $0x68] sm:$0xff]
  %v874 = vld [vmem:[%s7 + $0x70] sm:$0xff]
  %v875 = vld [vmem:[%s7 + $0x78] sm:$0xff]
  %v876 = vld [vmem:[%s8] sm:$0x1]
  %v878 = vlaneseq
  %v879 = vshrl.u32 %v878, 7
  %v880 = vsub.s32 0, %v879
  %v881 = vrot.slane %v876, %v880
  %883 = vmatprep.subr.mxu0 0.0
  %884 = vmatpush1.msra.mxu0 %v860
  %885 = vmatprep.subr.mxu0 0.0
  %886 = vmatpush1.msra.mxu0 %v861
  %887 = vmatprep.subr.mxu0 0.0
  %888 = vmatpush1.msra.mxu0 %v862
  %889 = vmatprep.subr.mxu0 0.0
  %890 = vmatpush1.msra.mxu0 %v863
  %891 = vmatprep.subr.mxu0 0.0
  %892 = vmatpush1.msra.mxu0 %v864
  %893 = vmatprep.subr.mxu0 0.0
  %894 = vmatpush1.msra.mxu0 %v865
  %895 = vmatprep.subr.mxu0 0.0
  %896 = vmatpush1.msra.mxu0 %v866
  %897 = vmatprep.subr.mxu0 0.0
  %898 = vmatpush1.msra.mxu0 %v867
  %899 = vmatprep.subr.mxu0 0.0
  %900 = vmatpush1.msra.mxu0 %v868
  %901 = vmatprep.subr.mxu0 0.0
  %902 = vmatpush1.msra.mxu0 %v869
  %903 = vmatprep.subr.mxu0 0.0
  %904 = vmatpush1.msra.mxu0 %v870
  %905 = vmatprep.subr.mxu0 0.0
  %906 = vmatpush1.msra.mxu0 %v871
  %907 = vmatprep.subr.mxu0 0.0
  %908 = vmatpush1.msra.mxu0 %v872
  %909 = vmatprep.subr.mxu0 0.0
  %910 = vmatpush1.msra.mxu0 %v873
  %911 = vmatprep.subr.mxu0 0.0
  %912 = vmatpush1.msra.mxu0 %v874
  %913 = vmatprep.subr.mxu0 0.0
  %914 = vmatpush1.msra.mxu0 %v875
  %915 = vmatprep.subr.mxu0 0.0
  %916 = vmatpush1.msra.mxu0 0.0
  %917 = vmatprep.subr.mxu0 0.0
  %918 = vmatpush1.msra.mxu0 0.0
  %919 = vmatprep.subr.mxu0 0.0
  %920 = vmatpush1.msra.mxu0 0.0
  %921 = vmatprep.subr.mxu0 0.0
  %922 = vmatpush1.msra.mxu0 0.0
  %923 = vmatprep.subr.mxu0 0.0
  %924 = vmatpush1.msra.mxu0 0.0
  %925 = vmatprep.subr.mxu0 0.0
  %926 = vmatpush1.msra.mxu0 0.0
  %927 = vmatprep.subr.mxu0 0.0
  %928 = vmatpush1.msra.mxu0 0.0
  %929 = vmatprep.subr.mxu0 0.0
  %930 = vmatpush1.msra.mxu0 0.0
  %931 = vmatprep.subr.mxu0 0.0
  %932 = vmatpush1.msra.mxu0 0.0
  %933 = vmatprep.subr.mxu0 0.0
  %934 = vmatpush1.msra.mxu0 0.0
  %935 = vmatprep.subr.mxu0 0.0
  %936 = vmatpush1.msra.mxu0 0.0
  %937 = vmatprep.subr.mxu0 0.0
  %938 = vmatpush1.msra.mxu0 0.0
  %939 = vmatprep.subr.mxu0 0.0
  %940 = vmatpush1.msra.mxu0 0.0
  %941 = vmatprep.subr.mxu0 0.0
  %942 = vmatpush1.msra.mxu0 0.0
  %943 = vmatprep.subr.mxu0 0.0
  %944 = vmatpush1.msra.mxu0 0.0
  %945 = vmatprep.subr.mxu0 0.0
  %946 = vmatpush1.msra.mxu0 0.0
  %947 = vmatprep.mubr.f32.mxu0 0.0
  %948 = vmatmul.mubr.f32.gmra.mrb[0].mxu0 %v859
  %v949 = vpop.f32.mrb[0].mxu0
  %v950 = vadd.f32 %v881, %v949
  %v951 = vpop.f32.mrb[0].mxu0
  %952 = vdwg.mxu0
  %v953 = vmax.f32 %v950, 0.0
  %v954 = vld [vmem:[%s9] sm:$0xff]
  %v955 = vld [vmem:[%s9 + $0x8] sm:$0xff]
  %v956 = vld [vmem:[%s9 + $0x10] sm:$0xff]
  %v957 = vld [vmem:[%s9 + $0x18] sm:$0xff]
  %v958 = vld [vmem:[%s9 + $0x20] sm:$0xff]
  %v959 = vld [vmem:[%s9 + $0x28] sm:$0xff]
  %v960 = vld [vmem:[%s9 + $0x30] sm:$0xff]
  %v961 = vld [vmem:[%s9 + $0x38] sm:$0xff]
  %v962 = vld [vmem:[%s9 + $0x40] sm:$0xff]
  %v963 = vld [vmem:[%s9 + $0x48] sm:$0xff]
  %v964 = vld [vmem:[%s9 + $0x50] sm:$0xff]
  %v965 = vld [vmem:[%s9 + $0x58] sm:$0xff]
  %v966 = vld [vmem:[%s9 + $0x60] sm:$0xff]
  %v967 = vld [vmem:[%s9 + $0x68] sm:$0xff]
  %v968 = vld [vmem:[%s9 + $0x70] sm:$0xff]
  %v969 = vld [vmem:[%s9 + $0x78] sm:$0xff]
  %v970 = vld [vmem:[%s10] sm:$0x1]
  %v972 = vlaneseq
  %v973 = vshrl.u32 %v972, 7
  %v974 = vsub.s32 0, %v973
  %v975 = vrot.slane %v970, %v974
  %977 = vmatprep.subr.mxu0 0.0
  %978 = vmatpush1.msra.mxu0 %v954
  %979 = vmatprep.subr.mxu0 0.0
  %980 = vmatpush1.msra.mxu0 %v955
  %981 = vmatprep.subr.mxu0 0.0
  %982 = vmatpush1.msra.mxu0 %v956
  %983 = vmatprep.subr.mxu0 0.0
  %984 = vmatpush1.msra.mxu0 %v957
  %985 = vmatprep.subr.mxu0 0.0
  %986 = vmatpush1.msra.mxu0 %v958
  %987 = vmatprep.subr.mxu0 0.0
  %988 = vmatpush1.msra.mxu0 %v959
  %989 = vmatprep.subr.mxu0 0.0
  %990 = vmatpush1.msra.mxu0 %v960
  %991 = vmatprep.subr.mxu0 0.0
  %992 = vmatpush1.msra.mxu0 %v961
  %993 = vmatprep.subr.mxu0 0.0
  %994 = vmatpush1.msra.mxu0 %v962
  %995 = vmatprep.subr.mxu0 0.0
  %996 = vmatpush1.msra.mxu0 %v963
  %997 = vmatprep.subr.mxu0 0.0
  %998 = vmatpush1.msra.mxu0 %v964
  %999 = vmatprep.subr.mxu0 0.0
  %1000 = vmatpush1.msra.mxu0 %v965
  %1001 = vmatprep.subr.mxu0 0.0
  %1002 = vmatpush1.msra.mxu0 %v966
  %1003 = vmatprep.subr.mxu0 0.0
  %1004 = vmatpush1.msra.mxu0 %v967
  %1005 = vmatprep.subr.mxu0 0.0
  %1006 = vmatpush1.msra.mxu0 %v968
  %1007 = vmatprep.subr.mxu0 0.0
  %1008 = vmatpush1.msra.mxu0 %v969
  %1009 = vmatprep.subr.mxu0 0.0
  %1010 = vmatpush1.msra.mxu0 0.0
  %1011 = vmatprep.subr.mxu0 0.0
  %1012 = vmatpush1.msra.mxu0 0.0
  %1013 = vmatprep.subr.mxu0 0.0
  %1014 = vmatpush1.msra.mxu0 0.0
  %1015 = vmatprep.subr.mxu0 0.0
  %1016 = vmatpush1.msra.mxu0 0.0
  %1017 = vmatprep.subr.mxu0 0.0
  %1018 = vmatpush1.msra.mxu0 0.0
  %1019 = vmatprep.subr.mxu0 0.0
  %1020 = vmatpush1.msra.mxu0 0.0
  %1021 = vmatprep.subr.mxu0 0.0
  %1022 = vmatpush1.msra.mxu0 0.0
  %1023 = vmatprep.subr.mxu0 0.0
  %1024 = vmatpush1.msra.mxu0 0.0
  %1025 = vmatprep.subr.mxu0 0.0
  %1026 = vmatpush1.msra.mxu0 0.0
  %1027 = vmatprep.subr.mxu0 0.0
  %1028 = vmatpush1.msra.mxu0 0.0
  %1029 = vmatprep.subr.mxu0 0.0
  %1030 = vmatpush1.msra.mxu0 0.0
  %1031 = vmatprep.subr.mxu0 0.0
  %1032 = vmatpush1.msra.mxu0 0.0
  %1033 = vmatprep.subr.mxu0 0.0
  %1034 = vmatpush1.msra.mxu0 0.0
  %1035 = vmatprep.subr.mxu0 0.0
  %1036 = vmatpush1.msra.mxu0 0.0
  %1037 = vmatprep.subr.mxu0 0.0
  %1038 = vmatpush1.msra.mxu0 0.0
  %1039 = vmatprep.subr.mxu0 0.0
  %1040 = vmatpush1.msra.mxu0 0.0
  %1041 = vmatprep.mubr.f32.mxu0 0.0
  %1042 = vmatmul.mubr.f32.gmra.mrb[0].mxu0 %v953
  %v1043 = vpop.f32.mrb[0].mxu0
  %v1044 = vadd.f32 %v975, %v1043
  %v1045 = vpop.f32.mrb[0].mxu0
  %1046 = vdwg.mxu0
  %v1047 = vxor.u32 %v1044, 2147483648
  %v1048 = vmul.f32 %v1047, 1.442695
  %v1049 = vpow.pop %v1048
  %v1050 = vadd.f32 %v1049, 1.0
  %v1051 = vrcp.pop %v1050
  %v1052 = vmul.f32 1.0, %v1051
  %1053 = vst [vmem:[%s11] sm:$0xff] %v1052
  // Predicated region
  $region46: #{mlp_forward.1} parent=0 // pred_check
    _
  $region47: #{mlp_forward.1} parent=0 // pred_check_branch
    %1055 = sbr.rel (0) target = $region49
  $region48: #{mlp_forward.1} parent=0 // pred_region
    _
  $region49: #{mlp_forward.1} parent=0 // pred_fallthru
    _
  // Predicated region
  $region50: #{mlp_forward.1} parent=0 // pred_check
    _
  $region51: #{mlp_forward.1} parent=0 // pred_check_branch
    %1057 = sbr.rel (0) target = $region53
  $region52: #{mlp_forward.1} parent=0 // pred_region
    _
  $region53: #{mlp_forward.1} parent=0 // pred_fallthru
    _

</llo_original>
